<compile_context>
chip_gen: v7x
topology: tpu7x:2x2x1
jax: 0.10.0
libtpu: 0.0.40
codegen_flags: <defaults>
</compile_context>

<pallas_src>
import functools

import jax
import jax.numpy as jnp
from jax.experimental import pallas as pl
from jax.experimental.pallas import tpu as pltpu


# --------------------------------------------------------------------------
# Kernels
# --------------------------------------------------------------------------
def _mask_as(m, dtype):
    """Widen a small (TB, TL) mask tile to `dtype` in-vreg (handles bool)."""
    if m.dtype == jnp.bool_:
        return jnp.where(m, jnp.ones((), dtype), jnp.zeros((), dtype))
    return m.astype(dtype)


def _masked_avg_kernel(x_ref, m_ref, o_ref, num_acc, den_acc):
    # x_ref: (TB, TL, E) native dtype; m_ref: (TB, TL); o_ref: (TB, E)
    # num_acc: (TB, E) f32 scratch; den_acc: (TB, 1) f32 scratch
    k = pl.program_id(1)

    @pl.when(k == 0)
    def _():
        num_acc[...] = jnp.zeros_like(num_acc)
        den_acc[...] = jnp.zeros_like(den_acc)

    x = x_ref[...]                                # native dtype, no f32 copy
    m = m_ref[...]                                # small (TB, TL) tile
    # Weighted partial sum over this L tile on the VPU; multiply in native
    # dtype, accumulate in f32.
    num_acc[...] += jnp.sum(x * _mask_as(m, x.dtype)[:, :, None],
                            axis=1, dtype=jnp.float32)
    den_acc[...] += jnp.sum(_mask_as(m, jnp.float32), axis=1, keepdims=True)

    @pl.when(k == pl.num_programs(1) - 1)
    def _():
        # One exact reciprocal per row, broadcast-multiplied across E lanes.
        # Zero-sum masks -> inf/nan, same as the PyTorch reference divide.
        out = num_acc[...] * pl.reciprocal(den_acc[...], approx=False)
        o_ref[...] = out.astype(o_ref.dtype)


def _avg_kernel(x_ref, o_ref, num_acc, *, inv_total_l):
    # No-mask path: plain mean over L, no mask DMA stream at all.
    k = pl.program_id(1)

    @pl.when(k == 0)
    def _():
        num_acc[...] = jnp.zeros_like(num_acc)

    num_acc[...] += jnp.sum(x_ref[...], axis=1, dtype=jnp.float32)

    @pl.when(k == pl.num_programs(1) - 1)
    def _():
        o_ref[...] = (num_acc[...] * inv_total_l).astype(o_ref.dtype)


# --------------------------------------------------------------------------
# Tiling / chip heuristics
# --------------------------------------------------------------------------
def _chip_profile():
    """(vmem_budget_bytes, target_tile_bytes, num_tensorcores) - best effort."""
    kind = ""
    try:
        kind = jax.devices()[0].device_kind.lower()
    except Exception:
        pass
    if "v7" in kind:   # 64 MiB VMEM/TC, 3.2 TB/s HBM, 2 TensorCores per chip
        return 48 * 2**20, 10 * 2**20, 2
    if "v6" in kind:   # 128 MiB VMEM, ~1.4 TB/s HBM
        return 96 * 2**20, 14 * 2**20, 1
    if "v5" in kind:   # 128 MiB VMEM, ~0.8 TB/s HBM, small default scoped VMEM
        return 64 * 2**20, 6 * 2**20, 1
    return 48 * 2**20, 8 * 2**20, 1   # unknown: conservative


def _select_tiles(B, L, E, x_itemsize, target_tile_bytes, num_tc):
    """Pick (tb, tl): batch rows per block and L chunk per block.

    Legality:
      * tb == B or tb % 8 == 0   (tb sits on the sublane axis of mask/out blocks)
      * tl == L or (tl % 128 == 0 and L % tl == 0)  (lane axis of the mask
        block / sublane axis of the x block; exact divisor so padded L never
        pollutes the accumulators)
    """
    row_bytes = max(1, L * E * x_itemsize)
    rows = int(target_tile_bytes // row_bytes)

    if rows >= min(B, 8):
        # Row-tiled regime: whole (L, E) slab per row, tile over batch only.
        tb = min(B, rows)
        if tb < B:
            tb = (tb // 8) * 8                       # sublane-legal, >= 8 here
        # Only 2-TensorCore chips benefit from forcing >= 2 "parallel" steps;
        # on single-TC chips the grid is a serial loop (keep a single block).
        if num_tc >= 2 and tb >= B and B >= 16:
            tb = max(8, (B // 2) // 8 * 8)
        return tb, L

    # L-tiled regime: one row slab exceeds the tile budget -> tile the
    # reduction over L (P3 accumulator pattern keeps us at HBM roofline).
    tb = min(B, 8)
    tl = L
    for m in range(L // 128, 0, -1):
        cand = m * 128
        if L % cand == 0 and tb * cand * E * x_itemsize <= target_tile_bytes:
            tl = cand
            break
    else:
        for m in range(1, L // 128 + 1):
            cand = m * 128
            if L % cand == 0:
                tl = cand
                break
    return tb, tl


def _vmem_limit(budget, *block_bytes):
    # Double-buffered blocks + headroom for accumulator scratch / Mosaic
    # internals; clamped to a generation-aware budget (never the full
    # physical VMEM of the chip).
    need = 2 * sum(block_bytes) + (2 << 20)
    return int(min(max(need, 16 * 2**20), budget))


# --------------------------------------------------------------------------
# Wrapper
# --------------------------------------------------------------------------
def global_mask_avg_pooling_1d(x, mask=None, *, l_tile=None):
    """x: (B, L, E); mask: (B, L), (B, L, 1) or None. Returns (B, E) in x.dtype."""
    B, L, E = x.shape
    out_dtype = x.dtype
    x_itemsize = jnp.dtype(x.dtype).itemsize

    vmem_budget, target_tile, num_tc = _chip_profile()
    tb, tl = _select_tiles(B, L, E, x_itemsize, target_tile, num_tc)
    if l_tile is not None:                 # testing / tuning override
        tl = int(l_tile)
    assert L % tl == 0, f"L tile {tl} must divide L={L}"

    grid = (pl.cdiv(B, tb), L // tl)       # partial trailing batch block OK

    x_spec = pl.BlockSpec((tb, tl, E), lambda i, k: (i, k, 0))
    out_spec = pl.BlockSpec((tb, E), lambda i, k: (i, 0))
    x_blk = tb * tl * E * x_itemsize
    o_blk = tb * E * jnp.dtype(out_dtype).itemsize

    def _params(limit):
        return pltpu.CompilerParams(
            dimension_semantics=("parallel", "arbitrary"),
            vmem_limit_bytes=limit)

    if mask is None:
        return pl.pallas_call(
            functools.partial(_avg_kernel, inv_total_l=1.0 / L),
            out_shape=jax.ShapeDtypeStruct((B, E), out_dtype),
            grid_spec=pltpu.PrefetchScalarGridSpec(
                num_scalar_prefetch=0,
                grid=grid,
                in_specs=[x_spec],
                out_specs=out_spec,
                scratch_shapes=[pltpu.VMEM((tb, E), jnp.float32)]),
            compiler_params=_params(_vmem_limit(vmem_budget, x_blk, o_blk)),
        )(x)

    # Normalize mask shape; keep float/bool masks in native dtype (widened
    # in-kernel).  Integer masks are converted once in the wrapper to avoid
    # narrow-int (32, 128) tiling constraints on the (tb, tl) block.
    if mask.ndim == 3 and mask.shape[-1] == 1:
        mask = mask[..., 0]
    assert mask.shape == (B, L), f"mask must be (B, L), got {mask.shape}"
    if not (jnp.issubdtype(mask.dtype, jnp.floating) or mask.dtype == jnp.bool_):
        mask = mask.astype(jnp.float32)
    m_blk = tb * tl * jnp.dtype(mask.dtype).itemsize

    return pl.pallas_call(
        _masked_avg_kernel,
        out_shape=jax.ShapeDtypeStruct((B, E), out_dtype),
        grid_spec=pltpu.PrefetchScalarGridSpec(
            num_scalar_prefetch=0,
            grid=grid,
            in_specs=[
                x_spec,                                          # x
                pl.BlockSpec((tb, tl), lambda i, k: (i, k)),     # mask (lane-dense L)
            ],
            out_specs=out_spec,
            scratch_shapes=[pltpu.VMEM((tb, E), jnp.float32),    # numerator
                            pltpu.VMEM((tb, 1), jnp.float32)]),  # denominator
        compiler_params=_params(_vmem_limit(vmem_budget, x_blk, m_blk, o_blk)),
    )(x, mask)


# --------------------------------------------------------------------------
# Reference + demo
# --------------------------------------------------------------------------
def _reference(x, mask=None):
    if mask is not None:
        m = mask.astype(jnp.float32)[..., None]
        return (jnp.sum(x.astype(jnp.float32) * m, axis=1)
                / jnp.sum(m, axis=1)).astype(x.dtype)
    return jnp.mean(x.astype(jnp.float32), axis=1).astype(x.dtype)


if __name__ == "__main__":
    key = jax.random.PRNGKey(0)
    B, L, E = 2, 8, 32
    kx, k2 = jax.random.split(key, 2)

    x = jax.random.normal(kx, (B, L, E), jnp.float32)
    mask = (jnp.arange(L)[None, :] < jnp.array([5, 7])[:, None]).astype(jnp.float32)

    # masked path (single L step)
    out_masked = jax.block_until_ready(global_mask_avg_pooling_1d(x, mask=mask))
    ref_masked = _reference(x, mask=mask)
    assert out_masked.shape == (B, E)
    assert jnp.allclose(out_masked, ref_masked, atol=1e-5, rtol=1e-5)

    # no-mask path (separate specialized kernel, no mask DMA stream)
    out_plain = jax.block_until_ready(global_mask_avg_pooling_1d(x, mask=None))
    ref_plain = _reference(x, mask=None)
    assert out_plain.shape == (B, E)
    assert jnp.allclose(out_plain, ref_plain, atol=1e-5, rtol=1e-5)

    # exercise the L-tiled accumulator path (2 grid steps over L)
    L2 = 256
    x2 = jax.random.normal(k2, (B, L2, E), jnp.float32)
    mask2 = (jnp.arange(L2)[None, :]
             < jnp.array([100, 256])[:, None]).astype(jnp.float32)
    out2 = jax.block_until_ready(
        global_mask_avg_pooling_1d(x2, mask=mask2, l_tile=128))
    assert jnp.allclose(out2, _reference(x2, mask=mask2), atol=1e-5, rtol=1e-5)

    print("KERNEL_OK")
</pallas_src>

<mosaic_0001>
module attributes {stable_mosaic.version = 11 : i64} {
  func.func @_masked_avg_kernel(%arg0: i32, %arg1: i32, %arg2: memref<2x8x32xf32, #tpu.memory_space<vmem>>, %arg3: memref<2x8xf32, #tpu.memory_space<vmem>>, %arg4: memref<2x32xf32, #tpu.memory_space<vmem>>, %arg5: memref<2x32xf32, #tpu.memory_space<vmem>>, %arg6: memref<2x1xf32, #tpu.memory_space<vmem>>) attributes {dimension_semantics = [#tpu.dimension_semantics<parallel>, #tpu.dimension_semantics<arbitrary>], iteration_bounds = array<i64: 1, 1>, scalar_prefetch = 0 : i64, scratch_operands = 2 : i64, tpu.core_type = #tpu.core_type<tc>, window_params = [{transform_indices = @transform_0, window_bounds = array<i64: 2, 8, 32>}, {transform_indices = @transform_1, window_bounds = array<i64: 2, 8>}, {transform_indices = @transform_2, window_bounds = array<i64: 2, 32>}]} {
    %c0_i32 = arith.constant 0 : i32
    %0 = arith.cmpi eq, %arg1, %c0_i32 : i32
    %1 = arith.extui %0 : i1 to i32
    %c0_i32_0 = arith.constant 0 : i32
    %2 = arith.cmpi ne, %1, %c0_i32_0 : i32
    scf.if %2 {
      %cst_16 = arith.constant 0.000000e+00 : f32
      %20 = vector.broadcast %cst_16 : f32 to vector<2x32xf32>
      %c0_17 = arith.constant 0 : index
      %c0_18 = arith.constant 0 : index
      %21 = vector.load %arg5[%c0_17, %c0_18] : memref<2x32xf32, #tpu.memory_space<vmem>>, vector<2x32xf32>
      tpu.vector_store %arg5[%c0_17, %c0_18], %20 {strides = array<i32>} : memref<2x32xf32, #tpu.memory_space<vmem>>, vector<2x32xf32>,
      %cst_19 = arith.constant 0.000000e+00 : f32
      %22 = vector.broadcast %cst_19 : f32 to vector<2x1xf32>
      %c0_20 = arith.constant 0 : index
      %c0_21 = arith.constant 0 : index
      %23 = vector.load %arg6[%c0_20, %c0_21] : memref<2x1xf32, #tpu.memory_space<vmem>>, vector<2x1xf32>
      tpu.vector_store %arg6[%c0_20, %c0_21], %22 {strides = array<i32>} : memref<2x1xf32, #tpu.memory_space<vmem>>, vector<2x1xf32>,
    } else {
    }
    %c0 = arith.constant 0 : index
    %c0_1 = arith.constant 0 : index
    %c0_2 = arith.constant 0 : index
    %3 = vector.load %arg2[%c0, %c0_1, %c0_2] : memref<2x8x32xf32, #tpu.memory_space<vmem>>, vector<2x8x32xf32>
    %c0_3 = arith.constant 0 : index
    %c0_4 = arith.constant 0 : index
    %4 = vector.load %arg3[%c0_3, %c0_4] : memref<2x8xf32, #tpu.memory_space<vmem>>, vector<2x8xf32>
    %c0_5 = arith.constant 0 : index
    %c0_6 = arith.constant 0 : index
    %5 = vector.load %arg5[%c0_5, %c0_6] : memref<2x32xf32, #tpu.memory_space<vmem>>, vector<2x32xf32>
    %6 = vector.shape_cast %4 : vector<2x8xf32> to vector<2x8x1xf32>
    %7 = vector.broadcast %6 : vector<2x8x1xf32> to vector<2x8x32xf32>
    %8 = arith.mulf %3, %7 : vector<2x8x32xf32>
    %cst = arith.constant dense<0.000000e+00> : vector<2x32xf32>
    %9 = vector.multi_reduction <add>, %8, %cst [1] : vector<2x8x32xf32> to vector<2x32xf32>
    %10 = arith.addf %5, %9 : vector<2x32xf32>
    %c0_7 = arith.constant 0 : index
    %c0_8 = arith.constant 0 : index
    %11 = vector.load %arg5[%c0_7, %c0_8] : memref<2x32xf32, #tpu.memory_space<vmem>>, vector<2x32xf32>
    tpu.vector_store %arg5[%c0_7, %c0_8], %10 {strides = array<i32>} : memref<2x32xf32, #tpu.memory_space<vmem>>, vector<2x32xf32>,
    %c0_9 = arith.constant 0 : index
    %c0_10 = arith.constant 0 : index
    %12 = vector.load %arg6[%c0_9, %c0_10] : memref<2x1xf32, #tpu.memory_space<vmem>>, vector<2x1xf32>
    %cst_11 = arith.constant dense<0.000000e+00> : vector<2xf32>
    %13 = vector.multi_reduction <add>, %4, %cst_11 [1] : vector<2x8xf32> to vector<2xf32>
    %14 = vector.shape_cast %13 : vector<2xf32> to vector<2x1xf32>
    %15 = arith.addf %12, %14 : vector<2x1xf32>
    %c0_12 = arith.constant 0 : index
    %c0_13 = arith.constant 0 : index
    %16 = vector.load %arg6[%c0_12, %c0_13] : memref<2x1xf32, #tpu.memory_space<vmem>>, vector<2x1xf32>
    tpu.vector_store %arg6[%c0_12, %c0_13], %15 {strides = array<i32>} : memref<2x1xf32, #tpu.memory_space<vmem>>, vector<2x1xf32>,
    %c0_i32_14 = arith.constant 0 : i32
    %17 = arith.cmpi eq, %arg1, %c0_i32_14 : i32
    %18 = arith.extui %17 : i1 to i32
    %c0_i32_15 = arith.constant 0 : i32
    %19 = arith.cmpi ne, %18, %c0_i32_15 : i32
    scf.if %19 {
      %c0_16 = arith.constant 0 : index
      %c0_17 = arith.constant 0 : index
      %20 = vector.load %arg5[%c0_16, %c0_17] : memref<2x32xf32, #tpu.memory_space<vmem>>, vector<2x32xf32>
      %c0_18 = arith.constant 0 : index
      %c0_19 = arith.constant 0 : index
      %21 = vector.load %arg6[%c0_18, %c0_19] : memref<2x1xf32, #tpu.memory_space<vmem>>, vector<2x1xf32>
      %22 = tpu.reciprocal %21 : vector<2x1xf32> -> vector<2x1xf32>
      %23 = vector.broadcast %22 : vector<2x1xf32> to vector<2x32xf32>
      %24 = arith.mulf %20, %23 : vector<2x32xf32>
      %c0_20 = arith.constant 0 : index
      %c0_21 = arith.constant 0 : index
      %25 = vector.load %arg4[%c0_20, %c0_21] : memref<2x32xf32, #tpu.memory_space<vmem>>, vector<2x32xf32>
      tpu.vector_store %arg4[%c0_20, %c0_21], %24 {strides = array<i32>} : memref<2x32xf32, #tpu.memory_space<vmem>>, vector<2x32xf32>,
    } else {
    }
    return
  }
  func.func @transform_0(%arg0: i32, %arg1: i32) -> (i32, i32, i32) {
    %c0_i32 = arith.constant 0 : i32
    %c0_i32_0 = arith.constant 0 : i32
    return %arg0, %arg1, %c0_i32 : i32, i32, i32
  }
  func.func @transform_1(%arg0: i32, %arg1: i32) -> (i32, i32) {
    %c0_i32 = arith.constant 0 : i32
    return %arg0, %arg1 : i32, i32
  }
  func.func @transform_2(%arg0: i32, %arg1: i32) -> (i32, i32) {
    %c0_i32 = arith.constant 0 : i32
    %c0_i32_0 = arith.constant 0 : i32
    return %arg0, %c0_i32 : i32, i32
  }
}

</mosaic_0001>

<llo_original>
// kernel: tpu_custom_call.1
$region0: #{tpu_custom_call.1}
  #allocation0 [shape = 'u32[]', space=smem, size = 0x4, offset = 0x4, fixed_abs, tag = 'smem constant byte address 0x4 - core index']
  #allocation1 [shape = 'u32[144,128]{1,0:T(1,128)}', space=vmem, size = 0x12000, scoped, tag = 'internal scratch']
  #allocation2 [shape = 'f32[2,32]{1,0:T(2,128)}', space=vmem, size = 0x400, scoped, tag = 'scratch operand']
  #allocation3 [shape = 'f32[2,1]{1,0:T(2,128)}', space=vmem, size = 0x400, scoped, tag = 'scratch operand']
  %s0 = inlined_call_operand.hbm [shape: f32[2,8,32], index: 0, kind: input, shape index: {}]
  %s1 = inlined_call_operand.vmem [shape: f32[2,8], index: 1, kind: input, shape index: {}]
  %s2 = inlined_call_operand.hbm [shape: f32[2,32], index: 2, kind: output, shape index: {}]
  %s3 = sld [smem:[#allocation0]]
  $region30: #{tpu_custom_call.1} parent=0
    _
  %s5 = ssub.s32 1, %s3
  %s6 = scalar_select 0, %s5, %s3
  $region1: #{tpu_custom_call.1} parent=0
    #allocation4 [shape = 'u8[8192]{0}', space=vmem, size = 0x2000, scoped, tag = 'input window, operand 0, single buffered']
    #allocation5 [shape = 's32[1]{0}', space=sflag, size = 0x4, scoped, tag = 'scoped memory for tpu_custom_call.1']
    #allocation6 [shape = 's32[1]{0}', space=sflag, size = 0x4, scoped, tag = 'scoped memory for tpu_custom_call.1']
    #allocation7 [shape = 'u8[1024]{0}', space=vmem, size = 0x400, scoped, tag = 'output window, operand 0, single buffered']
    %7 = vsyncpa [#allocation5], 0
    %8 = vsyncpa [#allocation6], 0
    // Predicated region
    $region2: #{tpu_custom_call.1} parent=1 // pred_check
      _
    $region3: #{tpu_custom_call.1} parent=1 // pred_check_branch
      %10 = sbr.rel (0) target = $region5
    $region4: #{tpu_custom_call.1} parent=1 // pred_region
      %s12 = ssub.s32 256, 256
      %13 = vsyncadd [#allocation5], %s12
      %s14 = sshll.u32 [#allocation4], 4
      %s15 = int_to_ptr.vmem [resolvable:$true] %s14
      %20 = dma.hbm_to_vmem [thread:$0]  %s0, 256, %s15, [#allocation5], 128, 128, 8
    $region5: #{tpu_custom_call.1} parent=1 // pred_fallthru
      _
    // Predicated region
    $region6: #{tpu_custom_call.1} parent=1 // pred_check
      _
    $region7: #{tpu_custom_call.1} parent=1 // pred_check_branch
      %22 = sbr.rel (0) target = $region9
    $region8: #{tpu_custom_call.1} parent=1 // pred_region
      _
    $region9: #{tpu_custom_call.1} parent=1 // pred_fallthru
      _
    // Predicated region
    $region10: #{tpu_custom_call.1} parent=1 // pred_check
      _
    $region11: #{tpu_custom_call.1} parent=1 // pred_check_branch
      %24 = sbr.rel (0) target = $region13
    $region12: #{tpu_custom_call.1} parent=1 // pred_region
      %25 = dma.done [#allocation5], 256
    $region13: #{tpu_custom_call.1} parent=1 // pred_fallthru
      _
    %p26 = scmp.eq.s32.totalorder 0, 0
    // Predicated region
    $region14: #{tpu_custom_call.1} parent=1 // pred_check
      %p27 = pneg %p26
    $region15: #{tpu_custom_call.1} parent=1 // pred_check_branch
      %29 = sbr.rel (%p27) target = $region17
    $region16: #{tpu_custom_call.1} parent=1 // pred_region
      %vm30 = vcmask 254976
      %31 = vst.msk [vmem:[#allocation2] sm:$0x3] %vm30, 0.0
      %vm32 = vcmask 1024
      %33 = vst.msk [vmem:[#allocation3] sm:$0x3] %vm32, 0.0
    $region17: #{tpu_custom_call.1} parent=1 // pred_fallthru
      _
    %v34 = vld [vmem:[#allocation4] sm:$0xff]
    %v35 = vld [vmem:[#allocation4 + $0x8] sm:$0xff]
    %v36 = vld [vmem:[%s1] sm:$0x3]
    %v37 = vld [vmem:[#allocation2] sm:$0x3]
    %v38 = vlaneseq
    %v39 = vshrl.u32 %v38, 7
    %v40 = vsub.s32 0, %v39
    %v41 = vrot.slane %v36, %v40
    %43 = vbcast.lane.b32.xlu0 %v41, 256
    %v44 = vpop.permute.xlu0 %43
    %v45 = vlaneseq
    %v46 = vshrl.u32 %v45, 7
    %v47 = vsub.s32 1, %v46
    %v48 = vrot.slane %v36, %v47
    %50 = vbcast.lane.b32.xlu0 %v48, 256
    %v51 = vpop.permute.xlu0 %50
    %v52 = vmul.f32 %v34, %v44
    %v53 = vmul.f32 %v35, %v51
    %vm54 = vcmask 261120
    %v55 = vsel %vm54, %v52, 0.0
    %v56 = vrot.slane %v55, 4
    %v57 = vadd.f32 %v55, %v56
    %v58 = vrot.slane %v57, 2
    %v59 = vadd.f32 %v57, %v58
    %v60 = vrot.slane %v59, 1
    %v61 = vadd.f32 %v59, %v60
    %v62 = vsel %vm54, %v53, 0.0
    %v63 = vrot.slane %v62, 4
    %v64 = vadd.f32 %v62, %v63
    %v65 = vrot.slane %v64, 2
    %v66 = vadd.f32 %v64, %v65
    %v67 = vrot.slane %v66, 1
    %v68 = vadd.f32 %v66, %v67
    %vm71 = vcmask 1041409
    %v72 = vsel %vm71, %v68, %v61
    %v74 = vadd.f32 %v37, %v72
    %vm75 = vcmask 254976
    %76 = vst.msk [vmem:[#allocation2] sm:$0x3] %vm75, %v74
    %v77 = vld [vmem:[#allocation3] sm:$0x3]
    %vm78 = vcmask 58368
    %v79 = vsel %vm78, %v36, 0.0
    %80 = vadd.xlane.f32.xlu0 %v79
    %v81 = vpop.xlane.xlu0 %80
    %v82 = vadd.f32 %v77, %v81
    %vm83 = vcmask 1024
    %84 = vst.msk [vmem:[#allocation3] sm:$0x3] %vm83, %v82
    // Predicated region
    $region18: #{tpu_custom_call.1} parent=1 // pred_check
      %p85 = pneg %p26
    $region19: #{tpu_custom_call.1} parent=1 // pred_check_branch
      %87 = sbr.rel (%p85) target = $region21
    $region20: #{tpu_custom_call.1} parent=1 // pred_region
      %v88 = vld [vmem:[#allocation2] sm:$0x3]
      %v89 = vld [vmem:[#allocation3] sm:$0x3]
      %v90 = vrcp.pop %v89
      %92 = vset.pattern.permute.xlu0 0
      %93 = vperm.xlu0 %92, %v90
      %v94 = vpop.permute.xlu0 %93
      %v96 = vmul.f32 %v88, %v94
      %97 = vst.msk [vmem:[#allocation7] sm:$0x3] %vm75, %v96
    $region21: #{tpu_custom_call.1} parent=1 // pred_fallthru
      _
    // Predicated region
    $region22: #{tpu_custom_call.1} parent=1 // pred_check
      _
    $region23: #{tpu_custom_call.1} parent=1 // pred_check_branch
      %99 = sbr.rel (0) target = $region25
    $region24: #{tpu_custom_call.1} parent=1 // pred_region
      %s101 = ssub.s32 32, 32
      %102 = vsyncadd [#allocation6], %s101
      %s104 = sshll.u32 [#allocation7], 4
      %s105 = int_to_ptr.vmem [resolvable:$true] %s104
      %107 = dma.vmem_to_hbm [thread:$0]  %s105, 32, %s2, [#allocation6]
    $region25: #{tpu_custom_call.1} parent=1 // pred_fallthru
      _
    // Predicated region
    $region26: #{tpu_custom_call.1} parent=1 // pred_check
      _
    $region27: #{tpu_custom_call.1} parent=1 // pred_check_branch
      %109 = sbr.rel (0) target = $region29
    $region28: #{tpu_custom_call.1} parent=1 // pred_region
      %110 = dma.done [#allocation6], 32
    $region29: #{tpu_custom_call.1} parent=1 // pred_fallthru
      _
    %111 = vsyncpa [#allocation5], 1
    %112 = vsyncpa [#allocation6], 1

</llo_original>
